<compile_context>
chip_gen: v6e
topology: v6e:2x2x1
jax: 0.10.0
libtpu: 0.0.40
codegen_flags: <defaults>
</compile_context>

<pallas_src>
import jax
import jax.numpy as jnp
import numpy as np
from jax.experimental import pallas as pl
from jax.experimental.pallas import tpu as pltpu  # noqa: F401  (TPU backend)

LEAKY_SLOPE = 0.01  # PyTorch nn.LeakyReLU default
LANES = 128


def _rup8(n):
    return ((n + 7) // 8) * 8


# ----------------------------------------------------------------------------
# Pallas kernel (closure over static blob offsets)
# ----------------------------------------------------------------------------
def _make_kernel(w1_rows, offsets):
    o_w1, o_b1, o_wc, o_bo = offsets

    def kernel(x_lin_ref, x_seq_ref, blob_ref, out_ref):
        # x_lin_ref: (B, 2*obs)  lanes [0:obs)   = y_{t+1}
        #                        lanes [obs:2obs) = y_t
        # x_seq_ref: (B, 128)    lanes [2s:2s+obs) = mean_t(y_{0:t}), rest 0
        # blob_ref:  (208, 128)  packed, pre-folded parameters
        # out_ref:   (B, 128)    lane-dense output slab (real cols = out_dim)
        x_lin = x_lin_ref[...]
        x_seq = x_seq_ref[...]

        w1 = blob_ref[o_w1:o_w1 + w1_rows, :]   # (2*obs, 128) block-diag [w1; w1]
        b1 = blob_ref[o_b1:o_b1 + 1, :]         # (1, 128) [b1 | b1 | 0...]
        wc = blob_ref[o_wc:o_wc + LANES, :]     # (128, 128) [W_next; -W_yt; -W_seq; 0]
        bo = blob_ref[o_bo:o_bo + 1, :]         # (1, 128)

        # One Linear + LeakyReLU for both branches (lane-stacked).
        pre = jnp.dot(x_lin, w1, preferred_element_type=jnp.float32) + b1
        # Lanes >= 2*state_dim stay exactly 0 (zero weights/bias, LeakyReLU(0)=0).
        h = jnp.where(pre > 0, pre, LEAKY_SLOPE * pre)      # (B, 128)

        # Structural concat: seq_mean occupies lanes where h is exactly zero.
        h_cat = h + x_seq                                   # (B, 128)

        # Single merged output matmul (+ bias).
        out = jnp.dot(h_cat, wc, preferred_element_type=jnp.float32) + bo
        out_ref[...] = out                                  # lane-dense store

    return kernel


# ----------------------------------------------------------------------------
# One-time parameter folding + packing (NOT in the per-call path)
# ----------------------------------------------------------------------------
def pack_richid_params(params):
    obs_dim, state_dim = params["w1"].shape
    out_dim = params["mT"].shape[1]
    assert 2 * state_dim + obs_dim <= LANES, "lane budget exceeded"
    assert out_dim <= LANES

    # Fold the constant weight chain once.
    Wc = params["w2"] @ params["wm"]                        # (state, state)
    bc = params["b2"] @ params["wm"] + params["bm"]         # (1, state)
    W_next = Wc @ params["mT"]                              # (state, out)
    W_yt = Wc @ (params["aT"] @ params["mT"])               # (state, out)
    W_seq = params["wf"] @ (params["bkT"] @ params["mT"])   # (obs, out)
    b_out = (bc - bc @ params["aT"]) @ params["mT"]         # (1, out)

    w1_rows = 2 * obs_dim
    o_w1 = 0
    o_b1 = o_w1 + _rup8(w1_rows)
    o_wc = o_b1 + 8
    o_bo = o_wc + LANES
    rows = o_bo + 8                                         # 208 for obs=32

    w1 = params["w1"].astype(jnp.float32)
    b1 = params["b1"].astype(jnp.float32)[0]

    blob = jnp.zeros((rows, LANES), jnp.float32)
    # Block-diagonal first layer: next_obs -> lanes [0:s), y_t -> lanes [s:2s).
    blob = blob.at[o_w1:o_w1 + obs_dim, 0:state_dim].set(w1)
    blob = blob.at[o_w1 + obs_dim:o_w1 + 2 * obs_dim, state_dim:2 * state_dim].set(w1)
    blob = blob.at[o_b1, 0:state_dim].set(b1)
    blob = blob.at[o_b1, state_dim:2 * state_dim].set(b1)
    # Merged output weight [W_next; -W_yt; -W_seq]; rows >= 2s+obs stay 0.
    blob = blob.at[o_wc:o_wc + state_dim, 0:out_dim].set(W_next)
    blob = blob.at[o_wc + state_dim:o_wc + 2 * state_dim, 0:out_dim].set(-W_yt)
    blob = blob.at[o_wc + 2 * state_dim:o_wc + 2 * state_dim + obs_dim,
                   0:out_dim].set(-W_seq)
    blob = blob.at[o_bo, 0:out_dim].set(b_out[0])

    meta = {"obs_dim": obs_dim, "state_dim": state_dim, "out_dim": out_dim,
            "w1_rows": w1_rows, "offsets": (o_w1, o_b1, o_wc, o_bo)}
    return blob, meta


# ----------------------------------------------------------------------------
# Forward factory: pack once, return a jitted per-call closure
# ----------------------------------------------------------------------------
def make_richid_forward(params):
    blob, meta = pack_richid_params(params)                 # runs ONCE
    obs_dim = meta["obs_dim"]
    state_dim = meta["state_dim"]
    out_dim = meta["out_dim"]
    kernel = _make_kernel(meta["w1_rows"], meta["offsets"])

    @jax.jit
    def forward(curr_obs_seq, next_obs):
        B, T, od = curr_obs_seq.shape
        assert od == obs_dim

        # Tiny per-call prep (fused by XLA inside this jit).
        y_t = curr_obs_seq[:, -1, :]
        seq_mean = jnp.mean(curr_obs_seq.astype(jnp.float32), axis=1)   # (B, obs)
        x_lin = jnp.concatenate(
            [next_obs.astype(jnp.float32), y_t.astype(jnp.float32)], axis=1)
        x_seq = jnp.zeros((B, LANES), jnp.float32)
        x_seq = x_seq.at[:, 2 * state_dim:2 * state_dim + obs_dim].set(seq_mean)

        inputs = (x_lin, x_seq, blob)

        def full_spec(arr):
            shp = arr.shape
            return pl.BlockSpec(shp, lambda i, _n=len(shp): (0,) * _n)

        out_padded = pl.pallas_call(
            kernel,
            out_shape=jax.ShapeDtypeStruct((B, LANES), jnp.float32),
            grid_spec=pl.GridSpec(
                grid=(1,),
                in_specs=[full_spec(a) for a in inputs],
                out_specs=pl.BlockSpec((B, LANES), lambda i: (0, 0)),
            ),
        )(*inputs)
        return out_padded[:, :out_dim]

    return forward


# ----------------------------------------------------------------------------
# Pure-JAX reference (mirrors the PyTorch forward exactly, no folding)
# ----------------------------------------------------------------------------
def richid_ht_reference(curr_obs_seq, next_obs, params):
    def get_h_val(x):
        h = x @ params["w1"] + params["b1"]
        h = jnp.where(h > 0, h, LEAKY_SLOPE * h)
        h = h @ params["w2"] + params["b2"]
        return h @ params["wm"] + params["bm"]

    y_t = curr_obs_seq[:, -1, :]
    embed_y_t_1 = get_h_val(next_obs)
    embed_y_t = get_h_val(y_t)
    embed_y_0_t = jnp.mean(curr_obs_seq, axis=1) @ params["wf"]   # hat_f stand-in
    out = embed_y_t_1 - embed_y_t @ params["aT"] - embed_y_0_t @ params["bkT"]
    return out @ params["mT"]


# ----------------------------------------------------------------------------
# Main
# ----------------------------------------------------------------------------
if __name__ == "__main__":
    # Small shapes consistent with the 'feature' path of the module.
    B = 4            # batch
    T = 8            # sequence length (t+1 observations)
    obs_dim = 32
    state_dim = 32
    action_dim = 4
    k = 2
    out_dim = k * action_dim   # hat_M: (k*action_dim, state_dim)

    key = jax.random.PRNGKey(0)
    keys = jax.random.split(key, 12)

    def rnd(kk, shape, scale=0.1):
        return (scale * jax.random.normal(kk, shape)).astype(jnp.float32)

    # PyTorch Linear weight is (out, in); we store the transposed version for
    # x @ W style matmuls.
    hat_A = rnd(keys[0], (state_dim, state_dim))
    hat_B = rnd(keys[1], (state_dim, action_dim))
    hat_K = rnd(keys[2], (action_dim, state_dim))
    hat_M = rnd(keys[3], (out_dim, state_dim))
    bk = hat_B @ hat_K                                  # self.bk = B @ K

    params = {
        "w1": rnd(keys[4], (obs_dim, state_dim)),       # Linear(obs_dim, state_dim).weight.T
        "b1": rnd(keys[5], (1, state_dim)),
        "w2": rnd(keys[6], (state_dim, state_dim)),     # Linear(state_dim, state_dim).weight.T
        "b2": rnd(keys[7], (1, state_dim)),
        "wm": rnd(keys[8], (state_dim, state_dim)),     # m_layer.weight.T
        "bm": rnd(keys[9], (1, state_dim)),
        "aT": hat_A.T,                                  # hat_A.transpose(0, 1)
        "bkT": bk.T,                                    # bk.transpose(0, 1)
        "mT": hat_M.T,                                  # hat_M.transpose(0, 1)
        "wf": rnd(keys[10], (obs_dim, state_dim)),      # hat_f projection
    }

    curr_obs_seq = rnd(keys[11], (B, T, obs_dim), scale=1.0)
    next_obs = rnd(jax.random.fold_in(key, 99), (B, obs_dim), scale=1.0)

    forward = make_richid_forward(params)               # packs params ONCE
    out = forward(curr_obs_seq, next_obs)
    out = jax.block_until_ready(out)

    ref = richid_ht_reference(curr_obs_seq, next_obs, params)
    # Wrapper-side weight folding / merged contraction changes matmul
    # associativity vs the reference -> marginally looser tolerance.
    np.testing.assert_allclose(np.asarray(out), np.asarray(ref), rtol=2e-5, atol=2e-5)

    # TODO(synk): 'image' feature_type branch (Conv2d h_model) not implemented;
    # hat_f is a deterministic mean-over-time + linear-projection stand-in for
    # the externally supplied callable.
    print("KERNEL_OK")
</pallas_src>

<mosaic_0001>
module attributes {stable_mosaic.version = 11 : i64} {
  func.func @kernel(%arg0: i32, %arg1: memref<4x64xf32, #tpu.memory_space<vmem>>, %arg2: memref<4x128xf32, #tpu.memory_space<vmem>>, %arg3: memref<208x128xf32, #tpu.memory_space<vmem>>, %arg4: memref<4x128xf32, #tpu.memory_space<vmem>>) attributes {dimension_semantics = [#tpu.dimension_semantics<arbitrary>], iteration_bounds = array<i64: 1>, scalar_prefetch = 0 : i64, scratch_operands = 0 : i64, tpu.core_type = #tpu.core_type<tc>, window_params = [{pipeline_mode = #tpu.pipeline_mode<synchronous>, transform_indices = @transform_0, window_bounds = array<i64: 4, 64>}, {pipeline_mode = #tpu.pipeline_mode<synchronous>, transform_indices = @transform_1, window_bounds = array<i64: 4, 128>}, {pipeline_mode = #tpu.pipeline_mode<synchronous>, transform_indices = @transform_2, window_bounds = array<i64: 208, 128>}, {pipeline_mode = #tpu.pipeline_mode<synchronous>, transform_indices = @transform_3, window_bounds = array<i64: 4, 128>}]} {
    %c0 = arith.constant 0 : index
    %c0_0 = arith.constant 0 : index
    %0 = vector.load %arg1[%c0, %c0_0] : memref<4x64xf32, #tpu.memory_space<vmem>>, vector<4x64xf32>
    %c0_1 = arith.constant 0 : index
    %c0_2 = arith.constant 0 : index
    %1 = vector.load %arg2[%c0_1, %c0_2] : memref<4x128xf32, #tpu.memory_space<vmem>>, vector<4x128xf32>
    %c0_3 = arith.constant 0 : index
    %c0_4 = arith.constant 0 : index
    %2 = vector.load %arg3[%c0_3, %c0_4] : memref<208x128xf32, #tpu.memory_space<vmem>>, vector<64x128xf32>
    %c64 = arith.constant 64 : index
    %c0_5 = arith.constant 0 : index
    %3 = vector.load %arg3[%c64, %c0_5] : memref<208x128xf32, #tpu.memory_space<vmem>>, vector<1x128xf32>
    %c72 = arith.constant 72 : index
    %c0_6 = arith.constant 0 : index
    %4 = vector.load %arg3[%c72, %c0_6] : memref<208x128xf32, #tpu.memory_space<vmem>>, vector<128x128xf32>
    %c200 = arith.constant 200 : index
    %c0_7 = arith.constant 0 : index
    %5 = vector.load %arg3[%c200, %c0_7] : memref<208x128xf32, #tpu.memory_space<vmem>>, vector<1x128xf32>
    %cst = arith.constant dense<0.000000e+00> : vector<4x128xf32>
    %6 = tpu.matmul %0, %2, %cst {dimension_numbers = #tpu.dot_dimension_numbers<[1], [0], [0], [1], [0, 0, 1, 1], [], []>} : vector<4x64xf32>, vector<64x128xf32>, vector<4x128xf32> -> vector<4x128xf32>
    %7 = vector.broadcast %3 : vector<1x128xf32> to vector<4x128xf32>
    %8 = arith.addf %6, %7 : vector<4x128xf32>
    %cst_8 = arith.constant 0.000000e+00 : f32
    %9 = vector.broadcast %cst_8 : f32 to vector<4x128xf32>
    %10 = arith.cmpf ogt, %8, %9 : vector<4x128xf32>
    %cst_9 = arith.constant 0.00999999977 : f32
    %11 = vector.broadcast %cst_9 : f32 to vector<4x128xf32>
    %12 = arith.mulf %11, %8 : vector<4x128xf32>
    %13 = arith.select %10, %8, %12 : vector<4x128xi1>, vector<4x128xf32>
    %14 = arith.addf %13, %1 : vector<4x128xf32>
    %cst_10 = arith.constant dense<0.000000e+00> : vector<4x128xf32>
    %15 = tpu.matmul %14, %4, %cst_10 {dimension_numbers = #tpu.dot_dimension_numbers<[1], [0], [0], [1], [0, 0, 1, 1], [], []>} : vector<4x128xf32>, vector<128x128xf32>, vector<4x128xf32> -> vector<4x128xf32>
    %16 = vector.broadcast %5 : vector<1x128xf32> to vector<4x128xf32>
    %17 = arith.addf %15, %16 : vector<4x128xf32>
    %c0_11 = arith.constant 0 : index
    %c0_12 = arith.constant 0 : index
    %18 = vector.load %arg4[%c0_11, %c0_12] : memref<4x128xf32, #tpu.memory_space<vmem>>, vector<4x128xf32>
    tpu.vector_store %arg4[%c0_11, %c0_12], %17 {strides = array<i32>} : memref<4x128xf32, #tpu.memory_space<vmem>>, vector<4x128xf32>,
    return
  }
  func.func @transform_0(%arg0: i32) -> (i32, i32) {
    %c0_i32 = arith.constant 0 : i32
    %c0_i32_0 = arith.constant 0 : i32
    %c0_i32_1 = arith.constant 0 : i32
    return %c0_i32, %c0_i32_0 : i32, i32
  }
  func.func @transform_1(%arg0: i32) -> (i32, i32) {
    %c0_i32 = arith.constant 0 : i32
    %c0_i32_0 = arith.constant 0 : i32
    %c0_i32_1 = arith.constant 0 : i32
    return %c0_i32, %c0_i32_0 : i32, i32
  }
  func.func @transform_2(%arg0: i32) -> (i32, i32) {
    %c0_i32 = arith.constant 0 : i32
    %c0_i32_0 = arith.constant 0 : i32
    %c0_i32_1 = arith.constant 0 : i32
    return %c0_i32, %c0_i32_0 : i32, i32
  }
  func.func @transform_3(%arg0: i32) -> (i32, i32) {
    %c0_i32 = arith.constant 0 : i32
    %c0_i32_0 = arith.constant 0 : i32
    %c0_i32_1 = arith.constant 0 : i32
    return %c0_i32, %c0_i32_0 : i32, i32
  }
}

</mosaic_0001>

<llo_original>
// kernel: forward.1
$region0: #{forward.1}
  #allocation0 [shape = 'u32[]', space=smem, size = 0x4, offset = 0x4, fixed_abs, tag = 'smem constant byte address 0x4 - core index']
  #allocation1 [shape = 'u32[144,128]{1,0:T(1,128)}', space=vmem, size = 0x12000, scoped, tag = 'internal scratch']
  %s0 = inlined_call_operand.vmem [shape: f32[4,64], index: 0, kind: input, shape index: {}]
  %s1 = inlined_call_operand.vmem [shape: f32[4,128], index: 1, kind: input, shape index: {}]
  %s2 = inlined_call_operand.hbm [shape: f32[208,128], index: 2, kind: input, shape index: {}]
  %s3 = inlined_call_operand.hbm [shape: f32[4,128], index: 3, kind: output, shape index: {}]
  %s4 = sld [smem:[#allocation0]]
  $region26: #{forward.1} parent=0
    _
  %s6 = ssub.s32 1, %s4
  %s7 = scalar_select 0, %s6, %s4
  $region1: #{forward.1} parent=0
    #allocation2 [shape = 'u8[106496]{0}', space=vmem, size = 0x1a000, scoped, tag = 'input window, operand 2, single buffered']
    #allocation3 [shape = 's32[1]{0}', space=sflag, size = 0x4, scoped, tag = 'scoped memory for forward.1']
    #allocation4 [shape = 's32[1]{0}', space=sflag, size = 0x4, scoped, tag = 'scoped memory for forward.1']
    #allocation5 [shape = 'u8[2048]{0}', space=vmem, size = 0x800, scoped, tag = 'output window, operand 0, single buffered']
    %8 = vsyncpa [#allocation3], 0
    %9 = vsyncpa [#allocation4], 0
    // Predicated region
    $region2: #{forward.1} parent=1 // pred_check
      _
    $region3: #{forward.1} parent=1 // pred_check_branch
      %11 = sbr.rel (0) target = $region5
    $region4: #{forward.1} parent=1 // pred_region
      _
    $region5: #{forward.1} parent=1 // pred_fallthru
      _
    // Predicated region
    $region6: #{forward.1} parent=1 // pred_check
      _
    $region7: #{forward.1} parent=1 // pred_check_branch
      %13 = sbr.rel (0) target = $region9
    $region8: #{forward.1} parent=1 // pred_region
      _
    $region9: #{forward.1} parent=1 // pred_fallthru
      _
    // Predicated region
    $region10: #{forward.1} parent=1 // pred_check
      _
    $region11: #{forward.1} parent=1 // pred_check_branch
      %15 = sbr.rel (0) target = $region13
    $region12: #{forward.1} parent=1 // pred_region
      %s17 = ssub.s32 3328, 3328
      %18 = vsyncadd [#allocation3], %s17
      %s19 = sshll.u32 [#allocation2], 4
      %s20 = int_to_ptr.vmem [resolvable:$true] %s19
      %25 = dma.hbm_to_vmem [thread:$0]  %s2, 3328, %s20, [#allocation3], 128, 128, 8
    $region13: #{forward.1} parent=1 // pred_fallthru
      _
    // Predicated region
    $region14: #{forward.1} parent=1 // pred_check
      _
    $region15: #{forward.1} parent=1 // pred_check_branch
      %27 = sbr.rel (0) target = $region17
    $region16: #{forward.1} parent=1 // pred_region
      %28 = dma.done [#allocation3], 3328
    $region17: #{forward.1} parent=1 // pred_fallthru
      _
    %v29 = vld [vmem:[%s0] sm:$0xf]
    %v30 = vld [vmem:[%s1] sm:$0xf]
    %v31 = vld [vmem:[#allocation2] sm:$0xff]
    %v32 = vld [vmem:[#allocation2 + $0x8] sm:$0xff]
    %v33 = vld [vmem:[#allocation2 + $0x10] sm:$0xff]
    %v34 = vld [vmem:[#allocation2 + $0x18] sm:$0xff]
    %v35 = vld [vmem:[#allocation2 + $0x20] sm:$0xff]
    %v36 = vld [vmem:[#allocation2 + $0x28] sm:$0xff]
    %v37 = vld [vmem:[#allocation2 + $0x30] sm:$0xff]
    %v38 = vld [vmem:[#allocation2 + $0x38] sm:$0xff]
    %v39 = vld [vmem:[#allocation2 + $0x40] sm:$0x1]
    %v40 = vld [vmem:[#allocation2 + $0x48] sm:$0xff]
    %v41 = vld [vmem:[#allocation2 + $0x50] sm:$0xff]
    %v42 = vld [vmem:[#allocation2 + $0x58] sm:$0xff]
    %v43 = vld [vmem:[#allocation2 + $0x60] sm:$0xff]
    %v44 = vld [vmem:[#allocation2 + $0x68] sm:$0xff]
    %v45 = vld [vmem:[#allocation2 + $0x70] sm:$0xff]
    %v46 = vld [vmem:[#allocation2 + $0x78] sm:$0xff]
    %v47 = vld [vmem:[#allocation2 + $0x80] sm:$0xff]
    %v48 = vld [vmem:[#allocation2 + $0x88] sm:$0xff]
    %v49 = vld [vmem:[#allocation2 + $0x90] sm:$0xff]
    %v50 = vld [vmem:[#allocation2 + $0x98] sm:$0xff]
    %v51 = vld [vmem:[#allocation2 + $0xa0] sm:$0xff]
    %v52 = vld [vmem:[#allocation2 + $0xa8] sm:$0xff]
    %v53 = vld [vmem:[#allocation2 + $0xb0] sm:$0xff]
    %v54 = vld [vmem:[#allocation2 + $0xb8] sm:$0xff]
    %v55 = vld [vmem:[#allocation2 + $0xc0] sm:$0xff]
    %v56 = vld [vmem:[#allocation2 + $0xc8] sm:$0x1]
    %v57 = vlaneseq
    %v58 = vshrl.u32 %v57, 7
    %v59 = vsub.s32 0, %v58
    %v60 = vrot.slane %v39, %v59
    %vm61 = vcmask 523264
    %v63 = vsel %vm61, %v29, 0
    %65 = vmatprep.subr.mxu0 0.0
    %66 = vmatpush1.msra.mxu0 0.0
    %67 = vmatprep.subr.mxu0 0.0
    %68 = vmatpush1.msra.mxu0 0.0
    %69 = vmatprep.subr.mxu0 0.0
    %70 = vmatpush1.msra.mxu0 0.0
    %71 = vmatprep.subr.mxu0 0.0
    %72 = vmatpush1.msra.mxu0 0.0
    %73 = vmatprep.subr.mxu0 0.0
    %74 = vmatpush1.msra.mxu0 0.0
    %75 = vmatprep.subr.mxu0 0.0
    %76 = vmatpush1.msra.mxu0 0.0
    %77 = vmatprep.subr.mxu0 0.0
    %78 = vmatpush1.msra.mxu0 0.0
    %79 = vmatprep.subr.mxu0 0.0
    %80 = vmatpush1.msra.mxu0 0.0
    %81 = vmatprep.subr.mxu0 0.0
    %82 = vmatpush1.msra.mxu0 %v38
    %83 = vmatprep.subr.mxu0 0.0
    %84 = vmatpush1.msra.mxu0 %v37
    %85 = vmatprep.subr.mxu0 0.0
    %86 = vmatpush1.msra.mxu0 %v36
    %87 = vmatprep.subr.mxu0 0.0
    %88 = vmatpush1.msra.mxu0 %v35
    %89 = vmatprep.subr.mxu0 0.0
    %90 = vmatpush1.msra.mxu0 %v34
    %91 = vmatprep.subr.mxu0 0.0
    %92 = vmatpush1.msra.mxu0 %v33
    %93 = vmatprep.subr.mxu0 0.0
    %94 = vmatpush1.msra.mxu0 %v32
    %95 = vmatprep.subr.mxu0 0.0
    %96 = vmatpush1.msra.mxu0 %v31
    %97 = vmatprep.subr.mxu0 0.0
    %98 = vmatpush2.msra.mxu0 0.0
    %99 = vmatprep.subr.mxu0 0.0
    %100 = vmatpush2.msra.mxu0 0.0
    %101 = vmatprep.subr.mxu0 0.0
    %102 = vmatpush2.msra.mxu0 0.0
    %103 = vmatprep.subr.mxu0 0.0
    %104 = vmatpush2.msra.mxu0 0.0
    %105 = vmatprep.subr.mxu0 0.0
    %106 = vmatpush2.msra.mxu0 0.0
    %107 = vmatprep.subr.mxu0 0.0
    %108 = vmatpush2.msra.mxu0 0.0
    %109 = vmatprep.subr.mxu0 0.0
    %110 = vmatpush2.msra.mxu0 0.0
    %111 = vmatprep.subr.mxu0 0.0
    %112 = vmatpush2.msra.mxu0 0.0
    %113 = vmatprep.subr.mxu0 0.0
    %114 = vmatpush2.msra.mxu0 0.0
    %115 = vmatprep.subr.mxu0 0.0
    %116 = vmatpush2.msra.mxu0 0.0
    %117 = vmatprep.subr.mxu0 0.0
    %118 = vmatpush2.msra.mxu0 0.0
    %119 = vmatprep.subr.mxu0 0.0
    %120 = vmatpush2.msra.mxu0 0.0
    %121 = vmatprep.subr.mxu0 0.0
    %122 = vmatpush2.msra.mxu0 0.0
    %123 = vmatprep.subr.mxu0 0.0
    %124 = vmatpush2.msra.mxu0 0.0
    %125 = vmatprep.subr.mxu0 0.0
    %126 = vmatpush2.msra.mxu0 0.0
    %127 = vmatprep.subr.mxu0 0.0
    %128 = vmatpush2.msra.mxu0 0.0
    %129 = vmatprep.mubr.f32.mxu0 0.0
    %130 = vmatmul.mubr.f32.gmra.mxu0 %v63
    %v131 = vpop.f32.mrf.mxu0
    %v132 = vadd.f32 %v60, %v131
    %v133 = vpop.f32.mrf.mxu0
    %134 = vdwg.mxu0
    %vm135 = vcmp.gt.f32.partialorder %v132, 0.0
    %v136 = vmul.f32 %v132, 0.01
    %v137 = vsel %vm135, %v132, %v136
    %v138 = vadd.f32 %v137, %v30
    %v139 = vlaneseq
    %v140 = vshrl.u32 %v139, 7
    %v141 = vsub.s32 0, %v140
    %v142 = vrot.slane %v56, %v141
    %143 = vmatprep.subr.mxu0 0.0
    %144 = vmatpush1.msra.mxu0 %v55
    %145 = vmatprep.subr.mxu0 0.0
    %146 = vmatpush1.msra.mxu0 %v54
    %147 = vmatprep.subr.mxu0 0.0
    %148 = vmatpush1.msra.mxu0 %v53
    %149 = vmatprep.subr.mxu0 0.0
    %150 = vmatpush1.msra.mxu0 %v52
    %151 = vmatprep.subr.mxu0 0.0
    %152 = vmatpush1.msra.mxu0 %v51
    %153 = vmatprep.subr.mxu0 0.0
    %154 = vmatpush1.msra.mxu0 %v50
    %155 = vmatprep.subr.mxu0 0.0
    %156 = vmatpush1.msra.mxu0 %v49
    %157 = vmatprep.subr.mxu0 0.0
    %158 = vmatpush1.msra.mxu0 %v48
    %159 = vmatprep.subr.mxu0 0.0
    %160 = vmatpush1.msra.mxu0 %v47
    %161 = vmatprep.subr.mxu0 0.0
    %162 = vmatpush1.msra.mxu0 %v46
    %163 = vmatprep.subr.mxu0 0.0
    %164 = vmatpush1.msra.mxu0 %v45
    %165 = vmatprep.subr.mxu0 0.0
    %166 = vmatpush1.msra.mxu0 %v44
    %167 = vmatprep.subr.mxu0 0.0
    %168 = vmatpush1.msra.mxu0 %v43
    %169 = vmatprep.subr.mxu0 0.0
    %170 = vmatpush1.msra.mxu0 %v42
    %171 = vmatprep.subr.mxu0 0.0
    %172 = vmatpush1.msra.mxu0 %v41
    %173 = vmatprep.subr.mxu0 0.0
    %174 = vmatpush1.msra.mxu0 %v40
    %175 = vmatprep.subr.mxu0 0.0
    %176 = vmatpush2.msra.mxu0 0.0
    %177 = vmatprep.subr.mxu0 0.0
    %178 = vmatpush2.msra.mxu0 0.0
    %179 = vmatprep.subr.mxu0 0.0
    %180 = vmatpush2.msra.mxu0 0.0
    %181 = vmatprep.subr.mxu0 0.0
    %182 = vmatpush2.msra.mxu0 0.0
    %183 = vmatprep.subr.mxu0 0.0
    %184 = vmatpush2.msra.mxu0 0.0
    %185 = vmatprep.subr.mxu0 0.0
    %186 = vmatpush2.msra.mxu0 0.0
    %187 = vmatprep.subr.mxu0 0.0
    %188 = vmatpush2.msra.mxu0 0.0
    %189 = vmatprep.subr.mxu0 0.0
    %190 = vmatpush2.msra.mxu0 0.0
    %191 = vmatprep.subr.mxu0 0.0
    %192 = vmatpush2.msra.mxu0 0.0
    %193 = vmatprep.subr.mxu0 0.0
    %194 = vmatpush2.msra.mxu0 0.0
    %195 = vmatprep.subr.mxu0 0.0
    %196 = vmatpush2.msra.mxu0 0.0
    %197 = vmatprep.subr.mxu0 0.0
    %198 = vmatpush2.msra.mxu0 0.0
    %199 = vmatprep.subr.mxu0 0.0
    %200 = vmatpush2.msra.mxu0 0.0
    %201 = vmatprep.subr.mxu0 0.0
    %202 = vmatpush2.msra.mxu0 0.0
    %203 = vmatprep.subr.mxu0 0.0
    %204 = vmatpush2.msra.mxu0 0.0
    %205 = vmatprep.subr.mxu0 0.0
    %206 = vmatpush2.msra.mxu0 0.0
    %207 = vmatprep.mubr.f32.mxu0 0.0
    %208 = vmatmul.mubr.f32.gmra.mxu0 %v138
    %v209 = vpop.f32.mrf.mxu0
    %v210 = vadd.f32 %v142, %v209
    %v211 = vpop.f32.mrf.mxu0
    %212 = vdwg.mxu0
    %213 = vst [vmem:[#allocation5] sm:$0xf] %v210
    // Predicated region
    $region18: #{forward.1} parent=1 // pred_check
      _
    $region19: #{forward.1} parent=1 // pred_check_branch
      %215 = sbr.rel (0) target = $region21
    $region20: #{forward.1} parent=1 // pred_region
      %s217 = ssub.s32 64, 64
      %218 = vsyncadd [#allocation4], %s217
      %s220 = sshll.u32 [#allocation5], 4
      %s221 = int_to_ptr.vmem [resolvable:$true] %s220
      %223 = dma.vmem_to_hbm [thread:$0]  %s221, 64, %s3, [#allocation4]
    $region21: #{forward.1} parent=1 // pred_fallthru
      _
    // Predicated region
    $region22: #{forward.1} parent=1 // pred_check
      _
    $region23: #{forward.1} parent=1 // pred_check_branch
      %225 = sbr.rel (0) target = $region25
    $region24: #{forward.1} parent=1 // pred_region
      %226 = dma.done [#allocation4], 64
    $region25: #{forward.1} parent=1 // pred_fallthru
      _
    %227 = vsyncpa [#allocation3], 1
    %228 = vsyncpa [#allocation4], 1

</llo_original>
